<compile_context>
chip_gen: v5e
topology: v5e:2x2
jax: 0.10.0
libtpu: 0.0.40
codegen_flags: <defaults>
</compile_context>

<pallas_src>
import jax
import jax.numpy as jnp
from jax.experimental import pallas as pl
from jax.experimental.pallas import tpu as pltpu


def _round_up(v, m):
    return (v + m - 1) // m * m


def fc_gaze_kernel(x_ref, w_ref, b_ref, o_ref):
    # x_ref: (tn, tk) activation tile, native dtype (f32/bf16)
    # w_ref: (tk, 2)  folded projection weight, same dtype as the activation
    # b_ref: (1, 2)   f32 bias
    # o_ref: (tn, 2)  f32 output tile, resident across the k axis (accumulator)
    k = pl.program_id(1)

    @pl.when(k == 0)
    def _init():
        o_ref[...] = jnp.broadcast_to(b_ref[...], o_ref.shape)

    o_ref[...] += jnp.dot(x_ref[...], w_ref[...],
                          preferred_element_type=jnp.float32)


def fc_gazeEs_forward(x_nchw, fc_weight, fc_bias, *, block_bytes=16 * 1024 * 1024):
    """x_nchw: (N, C, H, W); fc_weight: (2, C); fc_bias: (2,). Returns (N, 2) f32."""
    N, C, H, W = x_nchw.shape
    HW = H * W
    K = C * HW

    x2 = x_nchw.reshape(N, K)                      # row-major collapse, no copy
    itemsize = jnp.dtype(x2.dtype).itemsize

    # Fold the 1/HW pooling scale into the tiny projection weight; keep it in
    # the activation dtype so the MXU sees one native-dtype pass.
    wT = fc_weight.T.astype(jnp.float32)                               # (C, 2)
    w_folded = (jnp.repeat(wT, HW, axis=0) / jnp.float32(HW)).astype(x2.dtype)
    b2 = fc_bias.reshape(1, 2).astype(jnp.float32)                     # (1, 2)

    # --- K (reduction) tiling: bound the lane-padded weight slab (~128*tk*B) ---
    max_tk = max(128, (4 * 1024 * 1024) // (128 * itemsize))   # <= 4 MiB / buffer
    if K <= max_tk:
        tk = K
    else:
        tk = K                                     # fallback: single K block
        if K % 128 == 0:
            q = K // 128
            for d in range(min(q, max_tk // 128), 0, -1):
                if q % d == 0:                     # tk divides K -> no ragged K
                    tk = 128 * d
                    break
        # TODO(synk): masked ragged-K tiling for huge K not divisible by 128.

    # --- N (batch) tiling: ~block_bytes of activation per grid step ---
    tn = max(8, (block_bytes // max(tk * itemsize, 1)) // 8 * 8)
    tn = min(tn, 8192)                  # bound the 128-lane-padded output tile
    # Keep >= 2 batch steps when the problem is big enough to be worth splitting
    # across TensorCores (v7x megacore); the batch axis is the "parallel" one.
    if N * K * itemsize >= (32 << 20):
        half = _round_up((N + 1) // 2, 8)
        tn = min(tn, max(8, half))
    if tn >= N:
        tn = N                                     # single full-dim tile

    num_n = pl.cdiv(N, tn)
    num_k = pl.cdiv(K, tk)

    # Real (lane/sublane-padded) double-buffered VMEM footprints.
    x_buf = _round_up(tn, 16) * _round_up(tk, 128) * itemsize
    w_buf = _round_up(tk, 16) * 128 * itemsize
    o_buf = _round_up(tn, 8) * 128 * 4
    b_buf = 8 * 128 * 4
    vmem_need = 2 * (x_buf + w_buf + o_buf + b_buf) + (4 << 20)
    vmem_limit = int(min(max(vmem_need, 32 << 20), 56 << 20))

    cost = pl.CostEstimate(
        flops=2 * N * K * 2,
        transcendentals=0,
        bytes_accessed=N * K * itemsize + K * 2 * itemsize + N * 2 * 4,
    )

    out = pl.pallas_call(
        fc_gaze_kernel,
        out_shape=jax.ShapeDtypeStruct((N, 2), jnp.float32),
        grid=(num_n, num_k),
        in_specs=[
            pl.BlockSpec((tn, tk), lambda i, k: (i, k)),   # pipelined activation
            pl.BlockSpec((tk, 2), lambda i, k: (k, 0)),    # folded weight slab
            pl.BlockSpec((1, 2), lambda i, k: (0, 0)),     # resident bias
        ],
        out_specs=pl.BlockSpec((tn, 2), lambda i, k: (i, 0)),
        compiler_params=pltpu.CompilerParams(
            dimension_semantics=("parallel", "arbitrary"),
            vmem_limit_bytes=vmem_limit,
        ),
        cost_estimate=cost,
    )(x2, w_folded, b2)

    return out


if __name__ == "__main__":
    # Small shapes consistent with the module: batch=2, channels=4, spatial=16x16.
    N, C, H, W = 2, 4, 16, 16

    key = jax.random.PRNGKey(0)
    kx, kw, kb = jax.random.split(key, 3)

    x = jax.random.normal(kx, (N, C, H, W), dtype=jnp.float32)
    # Deterministic Linear(channel, 2) params (PyTorch default-style uniform bound).
    bound = 1.0 / jnp.sqrt(C)
    fc_weight = jax.random.uniform(kw, (2, C), minval=-bound, maxval=bound,
                                   dtype=jnp.float32)
    fc_bias = jax.random.uniform(kb, (2,), minval=-bound, maxval=bound,
                                 dtype=jnp.float32)

    out = fc_gazeEs_forward(x, fc_weight, fc_bias)
    out = jax.block_until_ready(out)

    # Reference in plain JAX (same semantics as the PyTorch forward, eval mode).
    ref = jnp.mean(x, axis=(2, 3)) @ fc_weight.T + fc_bias
    assert out.shape == (N, 2)
    # Tolerance accounts for a single-pass bf16 MXU lowering of the fused mean.
    assert jnp.allclose(out, ref, atol=2e-3, rtol=2e-3), (out, ref)

    print("KERNEL_OK")
</pallas_src>

<mosaic_0001>
module attributes {stable_mosaic.version = 11 : i64} {
  func.func @fc_gaze_kernel(%arg0: i32, %arg1: i32, %arg2: memref<2x1024xf32, #tpu.memory_space<vmem>>, %arg3: memref<1024x2xf32, #tpu.memory_space<vmem>>, %arg4: memref<1x2xf32, #tpu.memory_space<vmem>>, %arg5: memref<2x2xf32, #tpu.memory_space<vmem>>) attributes {dimension_semantics = [#tpu.dimension_semantics<parallel>, #tpu.dimension_semantics<arbitrary>], iteration_bounds = array<i64: 1, 1>, scalar_prefetch = 0 : i64, scratch_operands = 0 : i64, tpu.core_type = #tpu.core_type<tc>, window_params = [{transform_indices = @transform_0, window_bounds = array<i64: 2, 1024>}, {transform_indices = @transform_1, window_bounds = array<i64: 1024, 2>}, {pipeline_mode = #tpu.pipeline_mode<synchronous>, transform_indices = @transform_2, window_bounds = array<i64: 1, 2>}, {transform_indices = @transform_3, window_bounds = array<i64: 2, 2>}]} {
    %c0_i32 = arith.constant 0 : i32
    %0 = arith.cmpi eq, %arg1, %c0_i32 : i32
    %1 = arith.extui %0 : i1 to i32
    %c0_i32_0 = arith.constant 0 : i32
    %2 = arith.cmpi ne, %1, %c0_i32_0 : i32
    scf.if %2 {
      %c0_8 = arith.constant 0 : index
      %c0_9 = arith.constant 0 : index
      %9 = vector.load %arg4[%c0_8, %c0_9] : memref<1x2xf32, #tpu.memory_space<vmem>>, vector<1x2xf32>
      %10 = vector.shape_cast %9 : vector<1x2xf32> to vector<1x2xf32>
      %11 = vector.broadcast %10 : vector<1x2xf32> to vector<2x2xf32>
      %c0_10 = arith.constant 0 : index
      %c0_11 = arith.constant 0 : index
      %12 = vector.load %arg5[%c0_10, %c0_11] : memref<2x2xf32, #tpu.memory_space<vmem>>, vector<2x2xf32>
      tpu.vector_store %arg5[%c0_10, %c0_11], %11 {strides = array<i32>} : memref<2x2xf32, #tpu.memory_space<vmem>>, vector<2x2xf32>,
    } else {
    }
    %c0 = arith.constant 0 : index
    %c0_1 = arith.constant 0 : index
    %3 = vector.load %arg5[%c0, %c0_1] : memref<2x2xf32, #tpu.memory_space<vmem>>, vector<2x2xf32>
    %c0_2 = arith.constant 0 : index
    %c0_3 = arith.constant 0 : index
    %4 = vector.load %arg2[%c0_2, %c0_3] : memref<2x1024xf32, #tpu.memory_space<vmem>>, vector<2x1024xf32>
    %c0_4 = arith.constant 0 : index
    %c0_5 = arith.constant 0 : index
    %5 = vector.load %arg3[%c0_4, %c0_5] : memref<1024x2xf32, #tpu.memory_space<vmem>>, vector<1024x2xf32>
    %cst = arith.constant dense<0.000000e+00> : vector<2x2xf32>
    %6 = tpu.matmul %4, %5, %cst {dimension_numbers = #tpu.dot_dimension_numbers<[1], [0], [0], [1], [0, 0, 1, 1], [], []>} : vector<2x1024xf32>, vector<1024x2xf32>, vector<2x2xf32> -> vector<2x2xf32>
    %7 = arith.addf %3, %6 : vector<2x2xf32>
    %c0_6 = arith.constant 0 : index
    %c0_7 = arith.constant 0 : index
    %8 = vector.load %arg5[%c0_6, %c0_7] : memref<2x2xf32, #tpu.memory_space<vmem>>, vector<2x2xf32>
    tpu.vector_store %arg5[%c0_6, %c0_7], %7 {strides = array<i32>} : memref<2x2xf32, #tpu.memory_space<vmem>>, vector<2x2xf32>,
    return
  }
  func.func @transform_0(%arg0: i32, %arg1: i32) -> (i32, i32) {
    %c0_i32 = arith.constant 0 : i32
    return %arg0, %arg1 : i32, i32
  }
  func.func @transform_1(%arg0: i32, %arg1: i32) -> (i32, i32) {
    %c0_i32 = arith.constant 0 : i32
    %c0_i32_0 = arith.constant 0 : i32
    return %arg1, %c0_i32 : i32, i32
  }
  func.func @transform_2(%arg0: i32, %arg1: i32) -> (i32, i32) {
    %c0_i32 = arith.constant 0 : i32
    %c0_i32_0 = arith.constant 0 : i32
    %c0_i32_1 = arith.constant 0 : i32
    return %c0_i32, %c0_i32_0 : i32, i32
  }
  func.func @transform_3(%arg0: i32, %arg1: i32) -> (i32, i32) {
    %c0_i32 = arith.constant 0 : i32
    %c0_i32_0 = arith.constant 0 : i32
    return %arg0, %c0_i32 : i32, i32
  }
}

</mosaic_0001>

<llo_original>
// kernel: tpu_custom_call.1
$region0: #{tpu_custom_call.1}
  #allocation0 [shape = 'u32[]', space=smem, size = 0x4, offset = 0x4, fixed_abs, tag = 'smem constant byte address 0x4 - core index']
  #allocation1 [shape = 'u32[72,128]{1,0:T(1,128)}', space=vmem, size = 0x9000, scoped, tag = 'internal scratch']
  %s0 = inlined_call_operand.vmem [shape: f32[2,1024], index: 0, kind: input, shape index: {}]
  %s1 = inlined_call_operand.vmem [shape: f32[1024,2], index: 1, kind: input, shape index: {}]
  %s2 = inlined_call_operand.vmem [shape: f32[1,2], index: 2, kind: input, shape index: {}]
  %s3 = inlined_call_operand.hbm [shape: f32[2,2], index: 3, kind: output, shape index: {}]
  %s4 = sld [smem:[#allocation0]]
  $region26: #{tpu_custom_call.1} parent=0
    _
  %s6 = ssub.s32 1, %s4
  %s7 = scalar_select 0, %s6, %s4
  $region1: #{tpu_custom_call.1} parent=0
    #allocation2 [shape = 'u8[1024]{0}', space=vmem, size = 0x400, scoped, tag = 'output window, operand 0, single buffered']
    #allocation3 [shape = 's32[1]{0}', space=sflag, size = 0x4, scoped, tag = 'scoped memory for tpu_custom_call.1']
    %8 = vsyncpa [#allocation3], 0
    // Predicated region
    $region2: #{tpu_custom_call.1} parent=1 // pred_check
      _
    $region3: #{tpu_custom_call.1} parent=1 // pred_check_branch
      %10 = sbr.rel (0) target = $region5
    $region4: #{tpu_custom_call.1} parent=1 // pred_region
      _
    $region5: #{tpu_custom_call.1} parent=1 // pred_fallthru
      _
    // Predicated region
    $region6: #{tpu_custom_call.1} parent=1 // pred_check
      _
    $region7: #{tpu_custom_call.1} parent=1 // pred_check_branch
      %12 = sbr.rel (0) target = $region9
    $region8: #{tpu_custom_call.1} parent=1 // pred_region
      _
    $region9: #{tpu_custom_call.1} parent=1 // pred_fallthru
      _
    // Predicated region
    $region10: #{tpu_custom_call.1} parent=1 // pred_check
      _
    $region11: #{tpu_custom_call.1} parent=1 // pred_check_branch
      %14 = sbr.rel (0) target = $region13
    $region12: #{tpu_custom_call.1} parent=1 // pred_region
      _
    $region13: #{tpu_custom_call.1} parent=1 // pred_fallthru
      _
    %p15 = scmp.eq.s32.totalorder 0, 0
    // Predicated region
    $region14: #{tpu_custom_call.1} parent=1 // pred_check
      %p16 = pneg %p15
    $region15: #{tpu_custom_call.1} parent=1 // pred_check_branch
      %18 = sbr.rel (%p16) target = $region17
    $region16: #{tpu_custom_call.1} parent=1 // pred_region
      %v19 = vld [vmem:[%s2] sm:$0x1]
      %v21 = vperm.slane %v19, 0
      %vm23 = vcmask 9216
      %24 = vst.msk [vmem:[#allocation2] sm:$0x3] %vm23, %v21
    $region17: #{tpu_custom_call.1} parent=1 // pred_fallthru
      _
    %v25 = vld [vmem:[#allocation2] sm:$0x3]
    %v26 = vld [vmem:[%s0] sm:$0xff]
    %v27 = vld [vmem:[%s0 + $0x8] sm:$0xff]
    %v28 = vld [vmem:[%s1] sm:$0xff]
    %v29 = vld [vmem:[%s1 + $0x8] sm:$0xff]
    %v30 = vld [vmem:[%s1 + $0x10] sm:$0xff]
    %v31 = vld [vmem:[%s1 + $0x18] sm:$0xff]
    %v32 = vld [vmem:[%s1 + $0x20] sm:$0xff]
    %v33 = vld [vmem:[%s1 + $0x28] sm:$0xff]
    %v34 = vld [vmem:[%s1 + $0x30] sm:$0xff]
    %v35 = vld [vmem:[%s1 + $0x38] sm:$0xff]
    %v36 = vld [vmem:[%s1 + $0x40] sm:$0xff]
    %v37 = vld [vmem:[%s1 + $0x48] sm:$0xff]
    %v38 = vld [vmem:[%s1 + $0x50] sm:$0xff]
    %v39 = vld [vmem:[%s1 + $0x58] sm:$0xff]
    %v40 = vld [vmem:[%s1 + $0x60] sm:$0xff]
    %v41 = vld [vmem:[%s1 + $0x68] sm:$0xff]
    %v42 = vld [vmem:[%s1 + $0x70] sm:$0xff]
    %v43 = vld [vmem:[%s1 + $0x78] sm:$0xff]
    %v44 = vld [vmem:[%s1 + $0x80] sm:$0xff]
    %v45 = vld [vmem:[%s1 + $0x88] sm:$0xff]
    %v46 = vld [vmem:[%s1 + $0x90] sm:$0xff]
    %v47 = vld [vmem:[%s1 + $0x98] sm:$0xff]
    %v48 = vld [vmem:[%s1 + $0xa0] sm:$0xff]
    %v49 = vld [vmem:[%s1 + $0xa8] sm:$0xff]
    %v50 = vld [vmem:[%s1 + $0xb0] sm:$0xff]
    %v51 = vld [vmem:[%s1 + $0xb8] sm:$0xff]
    %v52 = vld [vmem:[%s1 + $0xc0] sm:$0xff]
    %v53 = vld [vmem:[%s1 + $0xc8] sm:$0xff]
    %v54 = vld [vmem:[%s1 + $0xd0] sm:$0xff]
    %v55 = vld [vmem:[%s1 + $0xd8] sm:$0xff]
    %v56 = vld [vmem:[%s1 + $0xe0] sm:$0xff]
    %v57 = vld [vmem:[%s1 + $0xe8] sm:$0xff]
    %v58 = vld [vmem:[%s1 + $0xf0] sm:$0xff]
    %v59 = vld [vmem:[%s1 + $0xf8] sm:$0xff]
    %v60 = vld [vmem:[%s1 + $0x100] sm:$0xff]
    %v61 = vld [vmem:[%s1 + $0x108] sm:$0xff]
    %v62 = vld [vmem:[%s1 + $0x110] sm:$0xff]
    %v63 = vld [vmem:[%s1 + $0x118] sm:$0xff]
    %v64 = vld [vmem:[%s1 + $0x120] sm:$0xff]
    %v65 = vld [vmem:[%s1 + $0x128] sm:$0xff]
    %v66 = vld [vmem:[%s1 + $0x130] sm:$0xff]
    %v67 = vld [vmem:[%s1 + $0x138] sm:$0xff]
    %v68 = vld [vmem:[%s1 + $0x140] sm:$0xff]
    %v69 = vld [vmem:[%s1 + $0x148] sm:$0xff]
    %v70 = vld [vmem:[%s1 + $0x150] sm:$0xff]
    %v71 = vld [vmem:[%s1 + $0x158] sm:$0xff]
    %v72 = vld [vmem:[%s1 + $0x160] sm:$0xff]
    %v73 = vld [vmem:[%s1 + $0x168] sm:$0xff]
    %v74 = vld [vmem:[%s1 + $0x170] sm:$0xff]
    %v75 = vld [vmem:[%s1 + $0x178] sm:$0xff]
    %v76 = vld [vmem:[%s1 + $0x180] sm:$0xff]
    %v77 = vld [vmem:[%s1 + $0x188] sm:$0xff]
    %v78 = vld [vmem:[%s1 + $0x190] sm:$0xff]
    %v79 = vld [vmem:[%s1 + $0x198] sm:$0xff]
    %v80 = vld [vmem:[%s1 + $0x1a0] sm:$0xff]
    %v81 = vld [vmem:[%s1 + $0x1a8] sm:$0xff]
    %v82 = vld [vmem:[%s1 + $0x1b0] sm:$0xff]
    %v83 = vld [vmem:[%s1 + $0x1b8] sm:$0xff]
    %v84 = vld [vmem:[%s1 + $0x1c0] sm:$0xff]
    %v85 = vld [vmem:[%s1 + $0x1c8] sm:$0xff]
    %v86 = vld [vmem:[%s1 + $0x1d0] sm:$0xff]
    %v87 = vld [vmem:[%s1 + $0x1d8] sm:$0xff]
    %v88 = vld [vmem:[%s1 + $0x1e0] sm:$0xff]
    %v89 = vld [vmem:[%s1 + $0x1e8] sm:$0xff]
    %v90 = vld [vmem:[%s1 + $0x1f0] sm:$0xff]
    %v91 = vld [vmem:[%s1 + $0x1f8] sm:$0xff]
    %v92 = vld [vmem:[%s1 + $0x200] sm:$0xff]
    %v93 = vld [vmem:[%s1 + $0x208] sm:$0xff]
    %v94 = vld [vmem:[%s1 + $0x210] sm:$0xff]
    %v95 = vld [vmem:[%s1 + $0x218] sm:$0xff]
    %v96 = vld [vmem:[%s1 + $0x220] sm:$0xff]
    %v97 = vld [vmem:[%s1 + $0x228] sm:$0xff]
    %v98 = vld [vmem:[%s1 + $0x230] sm:$0xff]
    %v99 = vld [vmem:[%s1 + $0x238] sm:$0xff]
    %v100 = vld [vmem:[%s1 + $0x240] sm:$0xff]
    %v101 = vld [vmem:[%s1 + $0x248] sm:$0xff]
    %v102 = vld [vmem:[%s1 + $0x250] sm:$0xff]
    %v103 = vld [vmem:[%s1 + $0x258] sm:$0xff]
    %v104 = vld [vmem:[%s1 + $0x260] sm:$0xff]
    %v105 = vld [vmem:[%s1 + $0x268] sm:$0xff]
    %v106 = vld [vmem:[%s1 + $0x270] sm:$0xff]
    %v107 = vld [vmem:[%s1 + $0x278] sm:$0xff]
    %v108 = vld [vmem:[%s1 + $0x280] sm:$0xff]
    %v109 = vld [vmem:[%s1 + $0x288] sm:$0xff]
    %v110 = vld [vmem:[%s1 + $0x290] sm:$0xff]
    %v111 = vld [vmem:[%s1 + $0x298] sm:$0xff]
    %v112 = vld [vmem:[%s1 + $0x2a0] sm:$0xff]
    %v113 = vld [vmem:[%s1 + $0x2a8] sm:$0xff]
    %v114 = vld [vmem:[%s1 + $0x2b0] sm:$0xff]
    %v115 = vld [vmem:[%s1 + $0x2b8] sm:$0xff]
    %v116 = vld [vmem:[%s1 + $0x2c0] sm:$0xff]
    %v117 = vld [vmem:[%s1 + $0x2c8] sm:$0xff]
    %v118 = vld [vmem:[%s1 + $0x2d0] sm:$0xff]
    %v119 = vld [vmem:[%s1 + $0x2d8] sm:$0xff]
    %v120 = vld [vmem:[%s1 + $0x2e0] sm:$0xff]
    %v121 = vld [vmem:[%s1 + $0x2e8] sm:$0xff]
    %v122 = vld [vmem:[%s1 + $0x2f0] sm:$0xff]
    %v123 = vld [vmem:[%s1 + $0x2f8] sm:$0xff]
    %v124 = vld [vmem:[%s1 + $0x300] sm:$0xff]
    %v125 = vld [vmem:[%s1 + $0x308] sm:$0xff]
    %v126 = vld [vmem:[%s1 + $0x310] sm:$0xff]
    %v127 = vld [vmem:[%s1 + $0x318] sm:$0xff]
    %v128 = vld [vmem:[%s1 + $0x320] sm:$0xff]
    %v129 = vld [vmem:[%s1 + $0x328] sm:$0xff]
    %v130 = vld [vmem:[%s1 + $0x330] sm:$0xff]
    %v131 = vld [vmem:[%s1 + $0x338] sm:$0xff]
    %v132 = vld [vmem:[%s1 + $0x340] sm:$0xff]
    %v133 = vld [vmem:[%s1 + $0x348] sm:$0xff]
    %v134 = vld [vmem:[%s1 + $0x350] sm:$0xff]
    %v135 = vld [vmem:[%s1 + $0x358] sm:$0xff]
    %v136 = vld [vmem:[%s1 + $0x360] sm:$0xff]
    %v137 = vld [vmem:[%s1 + $0x368] sm:$0xff]
    %v138 = vld [vmem:[%s1 + $0x370] sm:$0xff]
    %v139 = vld [vmem:[%s1 + $0x378] sm:$0xff]
    %v140 = vld [vmem:[%s1 + $0x380] sm:$0xff]
    %v141 = vld [vmem:[%s1 + $0x388] sm:$0xff]
    %v142 = vld [vmem:[%s1 + $0x390] sm:$0xff]
    %v143 = vld [vmem:[%s1 + $0x398] sm:$0xff]
    %v144 = vld [vmem:[%s1 + $0x3a0] sm:$0xff]
    %v145 = vld [vmem:[%s1 + $0x3a8] sm:$0xff]
    %v146 = vld [vmem:[%s1 + $0x3b0] sm:$0xff]
    %v147 = vld [vmem:[%s1 + $0x3b8] sm:$0xff]
    %v148 = vld [vmem:[%s1 + $0x3c0] sm:$0xff]
    %v149 = vld [vmem:[%s1 + $0x3c8] sm:$0xff]
    %v150 = vld [vmem:[%s1 + $0x3d0] sm:$0xff]
    %v151 = vld [vmem:[%s1 + $0x3d8] sm:$0xff]
    %v152 = vld [vmem:[%s1 + $0x3e0] sm:$0xff]
    %v153 = vld [vmem:[%s1 + $0x3e8] sm:$0xff]
    %v154 = vld [vmem:[%s1 + $0x3f0] sm:$0xff]
    %v155 = vld [vmem:[%s1 + $0x3f8] sm:$0xff]
    %158 = vst [vmem:[#allocation1] ss:$4 sm:$0xff] %v26
    %s159 = scalar_lea.vmem [#allocation1], 32
    %160 = vst [vmem:[%s159] ss:$4 sm:$0xff] %v27
    %v161 = vld.sshfl [vmem:[#allocation1] sm:$0xff pattern:$0x73625140]
    %v162 = vld.sshfl [vmem:[#allocation1 + $0x8] sm:$0xff pattern:$0x73625140]
    %v163 = vld.sshfl [vmem:[#allocation1 + $0x10] sm:$0xff pattern:$0x73625140]
    %v164 = vld.sshfl [vmem:[#allocation1 + $0x18] sm:$0xff pattern:$0x73625140]
    %v165 = vld.sshfl [vmem:[#allocation1 + $0x20] sm:$0xff pattern:$0x73625140]
    %v166 = vld.sshfl [vmem:[#allocation1 + $0x28] sm:$0xff pattern:$0x73625140]
    %v167 = vld.sshfl [vmem:[#allocation1 + $0x30] sm:$0xff pattern:$0x73625140]
    %v168 = vld.sshfl [vmem:[#allocation1 + $0x38] sm:$0xff pattern:$0x73625140]
    %177 = vmatpush.msra.mxu0 %v43
    %178 = vmatpush.msra.mxu0 %v42
    %179 = vmatpush.msra.mxu0 %v41
    %180 = vmatpush.msra.mxu0 %v40
    %181 = vmatpush.msra.mxu0 %v39
    %182 = vmatpush.msra.mxu0 %v38
    %183 = vmatpush.msra.mxu0 %v37
    %184 = vmatpush.msra.mxu0 %v36
    %185 = vmatpush.msra.mxu0 %v35
    %186 = vmatpush.msra.mxu0 %v34
    %187 = vmatpush.msra.mxu0 %v33
    %188 = vmatpush.msra.mxu0 %v32
    %189 = vmatpush.msra.mxu0 %v31
    %190 = vmatpush.msra.mxu0 %v30
    %191 = vmatpush.msra.mxu0 %v29
    %192 = vmatpush.msra.mxu0 %v28
    %193 = vmatmul.f32.gmra.mxu0 %v161
    %v194 = vpop.f32.mrf.mxu0
    %v195 = vadd.f32 0.0, %v194
    %196 = vdwg.mxu0
    %197 = vmatpush.msra.mxu0 %v59
    %198 = vmatpush.msra.mxu0 %v58
    %199 = vmatpush.msra.mxu0 %v57
    %200 = vmatpush.msra.mxu0 %v56
    %201 = vmatpush.msra.mxu0 %v55
    %202 = vmatpush.msra.mxu0 %v54
    %203 = vmatpush.msra.mxu0 %v53
    %204 = vmatpush.msra.mxu0 %v52
    %205 = vmatpush.msra.mxu0 %v51
    %206 = vmatpush.msra.mxu0 %v50
    %207 = vmatpush.msra.mxu0 %v49
    %208 = vmatpush.msra.mxu0 %v48
    %209 = vmatpush.msra.mxu0 %v47
    %210 = vmatpush.msra.mxu0 %v46
    %211 = vmatpush.msra.mxu0 %v45
    %212 = vmatpush.msra.mxu0 %v44
    %213 = vmatmul.f32.gmra.mxu0 %v162
    %v214 = vpop.f32.mrf.mxu0
    %v215 = vadd.f32 %v195, %v214
    %216 = vdwg.mxu0
    %217 = vmatpush.msra.mxu0 %v75
    %218 = vmatpush.msra.mxu0 %v74
    %219 = vmatpush.msra.mxu0 %v73
    %220 = vmatpush.msra.mxu0 %v72
    %221 = vmatpush.msra.mxu0 %v71
    %222 = vmatpush.msra.mxu0 %v70
    %223 = vmatpush.msra.mxu0 %v69
    %224 = vmatpush.msra.mxu0 %v68
    %225 = vmatpush.msra.mxu0 %v67
    %226 = vmatpush.msra.mxu0 %v66
    %227 = vmatpush.msra.mxu0 %v65
    %228 = vmatpush.msra.mxu0 %v64
    %229 = vmatpush.msra.mxu0 %v63
    %230 = vmatpush.msra.mxu0 %v62
    %231 = vmatpush.msra.mxu0 %v61
    %232 = vmatpush.msra.mxu0 %v60
    %233 = vmatmul.f32.gmra.mxu0 %v163
    %v234 = vpop.f32.mrf.mxu0
    %v235 = vadd.f32 %v215, %v234
    %236 = vdwg.mxu0
    %237 = vmatpush.msra.mxu0 %v91
    %238 = vmatpush.msra.mxu0 %v90
    %239 = vmatpush.msra.mxu0 %v89
    %240 = vmatpush.msra.mxu0 %v88
    %241 = vmatpush.msra.mxu0 %v87
    %242 = vmatpush.msra.mxu0 %v86
    %243 = vmatpush.msra.mxu0 %v85
    %244 = vmatpush.msra.mxu0 %v84
    %245 = vmatpush.msra.mxu0 %v83
    %246 = vmatpush.msra.mxu0 %v82
    %247 = vmatpush.msra.mxu0 %v81
    %248 = vmatpush.msra.mxu0 %v80
    %249 = vmatpush.msra.mxu0 %v79
    %250 = vmatpush.msra.mxu0 %v78
    %251 = vmatpush.msra.mxu0 %v77
    %252 = vmatpush.msra.mxu0 %v76
    %253 = vmatmul.f32.gmra.mxu0 %v164
    %v254 = vpop.f32.mrf.mxu0
    %v255 = vadd.f32 %v235, %v254
    %256 = vdwg.mxu0
    %257 = vmatpush.msra.mxu0 %v107
    %258 = vmatpush.msra.mxu0 %v106
    %259 = vmatpush.msra.mxu0 %v105
    %260 = vmatpush.msra.mxu0 %v104
    %261 = vmatpush.msra.mxu0 %v103
    %262 = vmatpush.msra.mxu0 %v102
    %263 = vmatpush.msra.mxu0 %v101
    %264 = vmatpush.msra.mxu0 %v100
    %265 = vmatpush.msra.mxu0 %v99
    %266 = vmatpush.msra.mxu0 %v98
    %267 = vmatpush.msra.mxu0 %v97
    %268 = vmatpush.msra.mxu0 %v96
    %269 = vmatpush.msra.mxu0 %v95
    %270 = vmatpush.msra.mxu0 %v94
    %271 = vmatpush.msra.mxu0 %v93
    %272 = vmatpush.msra.mxu0 %v92
    %273 = vmatmul.f32.gmra.mxu0 %v165
    %v274 = vpop.f32.mrf.mxu0
    %v275 = vadd.f32 %v255, %v274
    %276 = vdwg.mxu0
    %277 = vmatpush.msra.mxu0 %v123
    %278 = vmatpush.msra.mxu0 %v122
    %279 = vmatpush.msra.mxu0 %v121
    %280 = vmatpush.msra.mxu0 %v120
    %281 = vmatpush.msra.mxu0 %v119
    %282 = vmatpush.msra.mxu0 %v118
    %283 = vmatpush.msra.mxu0 %v117
    %284 = vmatpush.msra.mxu0 %v116
    %285 = vmatpush.msra.mxu0 %v115
    %286 = vmatpush.msra.mxu0 %v114
    %287 = vmatpush.msra.mxu0 %v113
    %288 = vmatpush.msra.mxu0 %v112
    %289 = vmatpush.msra.mxu0 %v111
    %290 = vmatpush.msra.mxu0 %v110
    %291 = vmatpush.msra.mxu0 %v109
    %292 = vmatpush.msra.mxu0 %v108
    %293 = vmatmul.f32.gmra.mxu0 %v166
    %v294 = vpop.f32.mrf.mxu0
    %v295 = vadd.f32 %v275, %v294
    %296 = vdwg.mxu0
    %297 = vmatpush.msra.mxu0 %v139
    %298 = vmatpush.msra.mxu0 %v138
    %299 = vmatpush.msra.mxu0 %v137
    %300 = vmatpush.msra.mxu0 %v136
    %301 = vmatpush.msra.mxu0 %v135
    %302 = vmatpush.msra.mxu0 %v134
    %303 = vmatpush.msra.mxu0 %v133
    %304 = vmatpush.msra.mxu0 %v132
    %305 = vmatpush.msra.mxu0 %v131
    %306 = vmatpush.msra.mxu0 %v130
    %307 = vmatpush.msra.mxu0 %v129
    %308 = vmatpush.msra.mxu0 %v128
    %309 = vmatpush.msra.mxu0 %v127
    %310 = vmatpush.msra.mxu0 %v126
    %311 = vmatpush.msra.mxu0 %v125
    %312 = vmatpush.msra.mxu0 %v124
    %313 = vmatmul.f32.gmra.mxu0 %v167
    %v314 = vpop.f32.mrf.mxu0
    %v315 = vadd.f32 %v295, %v314
    %316 = vdwg.mxu0
    %317 = vmatpush.msra.mxu0 %v155
    %318 = vmatpush.msra.mxu0 %v154
    %319 = vmatpush.msra.mxu0 %v153
    %320 = vmatpush.msra.mxu0 %v152
    %321 = vmatpush.msra.mxu0 %v151
    %322 = vmatpush.msra.mxu0 %v150
    %323 = vmatpush.msra.mxu0 %v149
    %324 = vmatpush.msra.mxu0 %v148
    %325 = vmatpush.msra.mxu0 %v147
    %326 = vmatpush.msra.mxu0 %v146
    %327 = vmatpush.msra.mxu0 %v145
    %328 = vmatpush.msra.mxu0 %v144
    %329 = vmatpush.msra.mxu0 %v143
    %330 = vmatpush.msra.mxu0 %v142
    %331 = vmatpush.msra.mxu0 %v141
    %332 = vmatpush.msra.mxu0 %v140
    %333 = vmatmul.f32.gmra.mxu0 %v168
    %v334 = vpop.f32.mrf.mxu0
    %v335 = vadd.f32 %v315, %v334
    %336 = vdwg.mxu0
    %v337 = vadd.f32 %v25, %v335
    %vm338 = vcmask 9216
    %339 = vst.msk [vmem:[#allocation2] sm:$0x3] %vm338, %v337
    // Predicated region
    $region18: #{tpu_custom_call.1} parent=1 // pred_check
      _
    $region19: #{tpu_custom_call.1} parent=1 // pred_check_branch
      %341 = sbr.rel (0) target = $region21
    $region20: #{tpu_custom_call.1} parent=1 // pred_region
      %343 = vsyncadd [#allocation3], 0
      %s345 = sshll.u32 [#allocation2], 4
      %s346 = int_to_ptr.vmem [resolvable:$true] %s345
      %s347 = sshll.u32 %s3, 4
      %s348 = int_to_ptr.hbm [resolvable:$true] %s347
      %350 = dma.vmem_to_hbm [thread:$0]  %s346, 32, %s348, [#allocation3]
    $region21: #{tpu_custom_call.1} parent=1 // pred_fallthru
      _
    // Predicated region
    $region22: #{tpu_custom_call.1} parent=1 // pred_check
      _
    $region23: #{tpu_custom_call.1} parent=1 // pred_check_branch
      %352 = sbr.rel (0) target = $region25
    $region24: #{tpu_custom_call.1} parent=1 // pred_region
      %354 = dma.done [#allocation3], 32
    $region25: #{tpu_custom_call.1} parent=1 // pred_fallthru
      _
    %355 = vsyncpa [#allocation3], 1

</llo_original>
